<compile_context>
chip_gen: v7x
topology: tpu7x:2x2x1
jax: 0.10.0
libtpu: 0.0.40
codegen_flags: <defaults>
</compile_context>

<pallas_src>
import math

import jax
import jax.numpy as jnp
from jax.experimental import pallas as pl
from jax.experimental.pallas import tpu as pltpu


def _gated_pool_kernel(x_ref, w_ref, b_ref, o_ref):
    # x_ref : VMEM (K, CB, TILE)  window-position-major input tile
    # w_ref : VMEM (CB, K)        per-channel depthwise conv weights (f32)
    # b_ref : VMEM (CB, 1)        per-channel conv bias (f32)
    # o_ref : VMEM (CB, TILE)
    x = x_ref[...].astype(jnp.float32)       # (K, CB, TILE)
    w = w_ref[...]                           # (CB, K)
    b = b_ref[...]                           # (CB, 1)
    k_total = x.shape[0]

    # Depthwise "conv" = weighted sum over the K window positions.
    # K is tiny (kh*kw == 4): static unroll, pure VPU work.
    gate_lin = b                             # broadcasts to (CB, TILE)
    for k in range(k_total):
        gate_lin = gate_lin + w[:, k:k + 1] * x[k]
    gate = jax.nn.sigmoid(gate_lin)

    avg_pool = jnp.mean(x, axis=0)           # (CB, TILE)
    max_pool = jnp.max(x, axis=0)            # (CB, TILE)

    blend = gate * max_pool + (1.0 - gate) * avg_pool
    o_ref[...] = blend.astype(o_ref.dtype)


def _pick_lane_tile(s, max_tile=4096):
    """Largest multiple-of-128 divisor of s that is <= max_tile (or s itself)."""
    if s <= max_tile or s % 128 != 0:
        return s                              # full axis (== array dim, allowed)
    t = (max_tile // 128) * 128
    while t >= 128:
        if s % t == 0:
            return t
        t -= 128
    return s


def _pick_channel_block(c):
    if c <= 8 or c % 8 != 0:
        return c                              # full channel axis
    return 8


def gated_pooling2d(x, weight, bias, *, kernel_size=2, stride=2):
    """x: (N, C, H, W); weight: (C, 1, kh, kw); bias: (C,). Returns (N, C, Ho, Wo)."""
    assert kernel_size == stride, "kernel supports kernel_size == stride only"
    N, C, H, W = x.shape
    kh = kw = kernel_size
    Ho, Wo = H // kh, W // kw
    K = kh * kw
    S = N * Ho * Wo

    # Window extraction to a lane-dense, window-position-major layout:
    #   (N, C, Ho, kh, Wo, kw) -> (kh, kw, C, N, Ho, Wo) -> (K, C, N*Ho*Wo)
    xw = x.reshape(N, C, Ho, kh, Wo, kw).transpose(3, 5, 1, 0, 2, 4)
    xw = xw.reshape(K, C, S)

    w = weight.reshape(C, K).astype(jnp.float32)      # (C, K)
    b = bias.reshape(C, 1).astype(jnp.float32)        # (C, 1)

    CB = _pick_channel_block(C)
    TILE = _pick_lane_tile(S)
    grid = (C // CB, S // TILE)

    out = pl.pallas_call(
        _gated_pool_kernel,
        out_shape=jax.ShapeDtypeStruct((C, S), x.dtype),
        grid=grid,
        in_specs=[
            pl.BlockSpec((K, CB, TILE), lambda ci, si: (0, ci, si)),
            pl.BlockSpec((CB, K), lambda ci, si: (ci, 0)),
            pl.BlockSpec((CB, 1), lambda ci, si: (ci, 0)),
        ],
        out_specs=pl.BlockSpec((CB, TILE), lambda ci, si: (ci, si)),
        compiler_params=pltpu.CompilerParams(
            dimension_semantics=("parallel", "parallel")),
    )(xw, w, b)

    # (C, N*Ho*Wo) -> (N, C, Ho, Wo)
    return out.reshape(C, N, Ho, Wo).transpose(1, 0, 2, 3)


def _reference(x, weight, bias, kernel_size=2):
    """Pure-JAX reference (same math as the PyTorch module)."""
    N, C, H, W = x.shape
    kh = kw = kernel_size
    Ho, Wo = H // kh, W // kw
    xw = x.reshape(N, C, Ho, kh, Wo, kw).transpose(0, 1, 3, 5, 2, 4)
    xw = xw.reshape(N, C, kh * kw, Ho, Wo)
    w = weight.reshape(1, C, kh * kw, 1, 1)
    gate = jax.nn.sigmoid(jnp.sum(w * xw, axis=2) + bias.reshape(1, C, 1, 1))
    avg_pool = jnp.mean(xw, axis=2)
    max_pool = jnp.max(xw, axis=2)
    return gate * max_pool + (1.0 - gate) * avg_pool


if __name__ == "__main__":
    key = jax.random.PRNGKey(0)
    k_x, k_w, k_b = jax.random.split(key, 3)

    # Module config: kernel_size=2, stride=2, in_channels=4
    N, C, H, W = 2, 4, 16, 16
    kernel_size = stride = 2

    x = jax.random.normal(k_x, (N, C, H, W), dtype=jnp.float32)

    # Deterministic Conv2d-style init (depthwise: fan_in = 1 * kh * kw)
    fan_in = kernel_size * kernel_size
    bound = 1.0 / math.sqrt(fan_in)
    weight = jax.random.uniform(
        k_w, (C, 1, kernel_size, kernel_size), jnp.float32, -bound, bound)
    bias = jax.random.uniform(k_b, (C,), jnp.float32, -bound, bound)

    out = gated_pooling2d(x, weight, bias,
                          kernel_size=kernel_size, stride=stride)
    out = jax.block_until_ready(out)

    ref = _reference(x, weight, bias, kernel_size=kernel_size)
    assert out.shape == (N, C, H // stride, W // stride)
    assert jnp.allclose(out, ref, atol=1e-5, rtol=1e-5)

    print("KERNEL_OK")
</pallas_src>

<mosaic_0001>
module attributes {stable_mosaic.version = 11 : i64} {
  func.func @_gated_pool_kernel(%arg0: i32, %arg1: i32, %arg2: memref<4x4x128xf32, #tpu.memory_space<vmem>>, %arg3: memref<4x4xf32, #tpu.memory_space<vmem>>, %arg4: memref<4x1xf32, #tpu.memory_space<vmem>>, %arg5: memref<4x128xf32, #tpu.memory_space<vmem>>) attributes {dimension_semantics = [#tpu.dimension_semantics<parallel>, #tpu.dimension_semantics<parallel>], iteration_bounds = array<i64: 1, 1>, scalar_prefetch = 0 : i64, scratch_operands = 0 : i64, tpu.core_type = #tpu.core_type<tc>, window_params = [{transform_indices = @transform_0, window_bounds = array<i64: 4, 4, 128>}, {transform_indices = @transform_1, window_bounds = array<i64: 4, 4>}, {transform_indices = @transform_2, window_bounds = array<i64: 4, 1>}, {transform_indices = @transform_3, window_bounds = array<i64: 4, 128>}]} {
    %c0 = arith.constant 0 : index
    %c0_0 = arith.constant 0 : index
    %c0_1 = arith.constant 0 : index
    %0 = vector.load %arg2[%c0, %c0_0, %c0_1] : memref<4x4x128xf32, #tpu.memory_space<vmem>>, vector<4x4x128xf32>
    %c0_2 = arith.constant 0 : index
    %c0_3 = arith.constant 0 : index
    %1 = vector.load %arg3[%c0_2, %c0_3] : memref<4x4xf32, #tpu.memory_space<vmem>>, vector<4x4xf32>
    %c0_4 = arith.constant 0 : index
    %c0_5 = arith.constant 0 : index
    %2 = vector.load %arg4[%c0_4, %c0_5] : memref<4x1xf32, #tpu.memory_space<vmem>>, vector<4x1xf32>
    %3 = vector.extract_strided_slice %1 {offsets = [0, 0], sizes = [4, 1], strides = [1, 1]} : vector<4x4xf32> to vector<4x1xf32>
    %4 = vector.extract_strided_slice %0 {offsets = [0, 0, 0], sizes = [1, 4, 128], strides = [1, 1, 1]} : vector<4x4x128xf32> to vector<1x4x128xf32>
    %5 = vector.shape_cast %4 : vector<1x4x128xf32> to vector<4x128xf32>
    %6 = vector.broadcast %3 : vector<4x1xf32> to vector<4x128xf32>
    %7 = arith.mulf %6, %5 : vector<4x128xf32>
    %8 = vector.broadcast %2 : vector<4x1xf32> to vector<4x128xf32>
    %9 = arith.addf %8, %7 : vector<4x128xf32>
    %10 = vector.extract_strided_slice %1 {offsets = [0, 1], sizes = [4, 1], strides = [1, 1]} : vector<4x4xf32> to vector<4x1xf32>
    %11 = vector.extract_strided_slice %0 {offsets = [1, 0, 0], sizes = [1, 4, 128], strides = [1, 1, 1]} : vector<4x4x128xf32> to vector<1x4x128xf32>
    %12 = vector.shape_cast %11 : vector<1x4x128xf32> to vector<4x128xf32>
    %13 = vector.broadcast %10 : vector<4x1xf32> to vector<4x128xf32>
    %14 = arith.mulf %13, %12 : vector<4x128xf32>
    %15 = arith.addf %9, %14 : vector<4x128xf32>
    %16 = vector.extract_strided_slice %1 {offsets = [0, 2], sizes = [4, 1], strides = [1, 1]} : vector<4x4xf32> to vector<4x1xf32>
    %17 = vector.extract_strided_slice %0 {offsets = [2, 0, 0], sizes = [1, 4, 128], strides = [1, 1, 1]} : vector<4x4x128xf32> to vector<1x4x128xf32>
    %18 = vector.shape_cast %17 : vector<1x4x128xf32> to vector<4x128xf32>
    %19 = vector.broadcast %16 : vector<4x1xf32> to vector<4x128xf32>
    %20 = arith.mulf %19, %18 : vector<4x128xf32>
    %21 = arith.addf %15, %20 : vector<4x128xf32>
    %22 = vector.extract_strided_slice %1 {offsets = [0, 3], sizes = [4, 1], strides = [1, 1]} : vector<4x4xf32> to vector<4x1xf32>
    %23 = vector.extract_strided_slice %0 {offsets = [3, 0, 0], sizes = [1, 4, 128], strides = [1, 1, 1]} : vector<4x4x128xf32> to vector<1x4x128xf32>
    %24 = vector.shape_cast %23 : vector<1x4x128xf32> to vector<4x128xf32>
    %25 = vector.broadcast %22 : vector<4x1xf32> to vector<4x128xf32>
    %26 = arith.mulf %25, %24 : vector<4x128xf32>
    %27 = arith.addf %21, %26 : vector<4x128xf32>
    %28 = arith.negf %27 : vector<4x128xf32>
    %29 = math.exp %28 : vector<4x128xf32>
    %cst = arith.constant 1.000000e+00 : f32
    %30 = vector.broadcast %cst : f32 to vector<4x128xf32>
    %31 = arith.addf %30, %29 : vector<4x128xf32>
    %32 = arith.divf %30, %31 : vector<4x128xf32>
    %cst_6 = arith.constant dense<0.000000e+00> : vector<4x128xf32>
    %33 = vector.multi_reduction <add>, %0, %cst_6 [0] : vector<4x4x128xf32> to vector<4x128xf32>
    %cst_7 = arith.constant 4.000000e+00 : f32
    %34 = vector.broadcast %cst_7 : f32 to vector<4x128xf32>
    %35 = arith.divf %33, %34 : vector<4x128xf32>
    %cst_8 = arith.constant dense<0xFF800000> : vector<4x128xf32>
    %36 = vector.multi_reduction <maximumf>, %0, %cst_8 [0] : vector<4x4x128xf32> to vector<4x128xf32>
    %37 = arith.mulf %32, %36 : vector<4x128xf32>
    %cst_9 = arith.constant 1.000000e+00 : f32
    %38 = vector.broadcast %cst_9 : f32 to vector<4x128xf32>
    %39 = arith.subf %38, %32 : vector<4x128xf32>
    %40 = arith.mulf %39, %35 : vector<4x128xf32>
    %41 = arith.addf %37, %40 : vector<4x128xf32>
    %c0_10 = arith.constant 0 : index
    %c0_11 = arith.constant 0 : index
    %42 = vector.load %arg5[%c0_10, %c0_11] : memref<4x128xf32, #tpu.memory_space<vmem>>, vector<4x128xf32>
    tpu.vector_store %arg5[%c0_10, %c0_11], %41 {strides = array<i32>} : memref<4x128xf32, #tpu.memory_space<vmem>>, vector<4x128xf32>,
    return
  }
  func.func @transform_0(%arg0: i32, %arg1: i32) -> (i32, i32, i32) {
    %c0_i32 = arith.constant 0 : i32
    %c0_i32_0 = arith.constant 0 : i32
    return %c0_i32, %arg0, %arg1 : i32, i32, i32
  }
  func.func @transform_1(%arg0: i32, %arg1: i32) -> (i32, i32) {
    %c0_i32 = arith.constant 0 : i32
    %c0_i32_0 = arith.constant 0 : i32
    return %arg0, %c0_i32 : i32, i32
  }
  func.func @transform_2(%arg0: i32, %arg1: i32) -> (i32, i32) {
    %c0_i32 = arith.constant 0 : i32
    %c0_i32_0 = arith.constant 0 : i32
    return %arg0, %c0_i32 : i32, i32
  }
  func.func @transform_3(%arg0: i32, %arg1: i32) -> (i32, i32) {
    %c0_i32 = arith.constant 0 : i32
    return %arg0, %arg1 : i32, i32
  }
}

</mosaic_0001>

<llo_original>
// kernel: tpu_custom_call.1
$region0: #{tpu_custom_call.1}
  #allocation0 [shape = 'u32[]', space=smem, size = 0x4, offset = 0x4, fixed_abs, tag = 'smem constant byte address 0x4 - core index']
  #allocation1 [shape = 'u32[144,128]{1,0:T(1,128)}', space=vmem, size = 0x12000, scoped, tag = 'internal scratch']
  %s0 = inlined_call_operand.hbm [shape: f32[4,4,128], index: 0, kind: input, shape index: {}]
  %s1 = inlined_call_operand.vmem [shape: f32[4,4], index: 1, kind: input, shape index: {}]
  %s2 = inlined_call_operand.vmem [shape: f32[4,1], index: 2, kind: input, shape index: {}]
  %s3 = inlined_call_operand.hbm [shape: f32[4,128], index: 3, kind: output, shape index: {}]
  %s4 = sld [smem:[#allocation0]]
  $region26: #{tpu_custom_call.1} parent=0
    _
  %s6 = ssub.s32 1, %s4
  %s7 = scalar_select 0, %s6, %s4
  $region1: #{tpu_custom_call.1} parent=0
    #allocation2 [shape = 'u8[8192]{0}', space=vmem, size = 0x2000, scoped, tag = 'input window, operand 0, single buffered']
    #allocation3 [shape = 's32[1]{0}', space=sflag, size = 0x4, scoped, tag = 'scoped memory for tpu_custom_call.1']
    #allocation4 [shape = 's32[1]{0}', space=sflag, size = 0x4, scoped, tag = 'scoped memory for tpu_custom_call.1']
    #allocation5 [shape = 'u8[2048]{0}', space=vmem, size = 0x800, scoped, tag = 'output window, operand 0, single buffered']
    %8 = vsyncpa [#allocation3], 0
    %9 = vsyncpa [#allocation4], 0
    // Predicated region
    $region2: #{tpu_custom_call.1} parent=1 // pred_check
      _
    $region3: #{tpu_custom_call.1} parent=1 // pred_check_branch
      %11 = sbr.rel (0) target = $region5
    $region4: #{tpu_custom_call.1} parent=1 // pred_region
      %s13 = ssub.s32 256, 256
      %14 = vsyncadd [#allocation3], %s13
      %s15 = sshll.u32 [#allocation2], 4
      %s16 = int_to_ptr.vmem [resolvable:$true] %s15
      %21 = dma.hbm_to_vmem [thread:$0]  %s0, 256, %s16, [#allocation3], 64, 64, 4
    $region5: #{tpu_custom_call.1} parent=1 // pred_fallthru
      _
    // Predicated region
    $region6: #{tpu_custom_call.1} parent=1 // pred_check
      _
    $region7: #{tpu_custom_call.1} parent=1 // pred_check_branch
      %23 = sbr.rel (0) target = $region9
    $region8: #{tpu_custom_call.1} parent=1 // pred_region
      _
    $region9: #{tpu_custom_call.1} parent=1 // pred_fallthru
      _
    // Predicated region
    $region10: #{tpu_custom_call.1} parent=1 // pred_check
      _
    $region11: #{tpu_custom_call.1} parent=1 // pred_check_branch
      %25 = sbr.rel (0) target = $region13
    $region12: #{tpu_custom_call.1} parent=1 // pred_region
      _
    $region13: #{tpu_custom_call.1} parent=1 // pred_fallthru
      _
    // Predicated region
    $region14: #{tpu_custom_call.1} parent=1 // pred_check
      _
    $region15: #{tpu_custom_call.1} parent=1 // pred_check_branch
      %27 = sbr.rel (0) target = $region17
    $region16: #{tpu_custom_call.1} parent=1 // pred_region
      %28 = dma.done [#allocation3], 256
    $region17: #{tpu_custom_call.1} parent=1 // pred_fallthru
      _
    %v29 = vld [vmem:[#allocation2] sm:$0xf]
    %v30 = vld [vmem:[#allocation2 + $0x4] sm:$0xf]
    %v31 = vld [vmem:[#allocation2 + $0x8] sm:$0xf]
    %v32 = vld [vmem:[#allocation2 + $0xc] sm:$0xf]
    %v33 = vld [vmem:[%s1] sm:$0xf]
    %v34 = vld [vmem:[%s2] sm:$0xf]
    %36 = vset.pattern.permute.xlu0 0
    %37 = vperm.xlu0 %36, %v33
    %v38 = vpop.permute.xlu0 %37
    %v40 = vmul.f32 %v38, %v29
    %42 = vset.pattern.permute.xlu0 0
    %43 = vperm.xlu0 %42, %v34
    %v44 = vpop.permute.xlu0 %43
    %v46 = vadd.f32 %v44, %v40
    %47 = vset.pattern.permute.xlu0 1
    %48 = vperm.xlu0 %47, %v33
    %v49 = vpop.permute.xlu0 %48
    %v51 = vmul.f32 %v49, %v30
    %v52 = vadd.f32 %v46, %v51
    %53 = vset.pattern.permute.xlu0 2
    %54 = vperm.xlu0 %53, %v33
    %v55 = vpop.permute.xlu0 %54
    %v57 = vmul.f32 %v55, %v31
    %v58 = vadd.f32 %v52, %v57
    %59 = vset.pattern.permute.xlu0 3
    %60 = vperm.xlu0 %59, %v33
    %v61 = vpop.permute.xlu0 %60
    %v63 = vmul.f32 %v61, %v32
    %v64 = vadd.f32 %v58, %v63
    %v65 = vxor.u32 %v64, 2147483648
    %v66 = vmul.f32 %v65, 1.442695
    %v67 = vpow.pop %v66
    %v68 = vadd.f32 %v67, 1.0
    %v69 = vrcp.pop %v68
    %v70 = vmul.f32 1.0, %v69
    %vm71 = vcmask 1043456
    %v72 = vsel %vm71, %v29, 0.0
    %v73 = vsel %vm71, %v30, 0.0
    %v74 = vadd.f32 %v72, %v73
    %v75 = vsel %vm71, %v31, 0.0
    %v76 = vadd.f32 %v74, %v75
    %v77 = vsel %vm71, %v32, 0.0
    %v78 = vadd.f32 %v76, %v77
    %v79 = vrcp.pop 4.0
    %v80 = vmul.f32 %v78, %v79
    %v81 = vsel %vm71, %v29, -inf
    %v82 = vsel %vm71, %v30, -inf
    %v83 = vsel %vm71, %v31, -inf
    %v84 = vsel %vm71, %v32, -inf
    %v85 = vmax.f32 %v81, %v82
    %v86 = vmax.f32 %v83, %v84
    %v87 = vmax.f32 %v85, %v86
    %v88 = vmul.f32 %v70, %v87
    %v89 = vsub.f32 1.0, %v70
    %v90 = vmul.f32 %v89, %v80
    %v91 = vadd.f32 %v88, %v90
    %92 = vst [vmem:[#allocation5] sm:$0xf] %v91
    // Predicated region
    $region18: #{tpu_custom_call.1} parent=1 // pred_check
      _
    $region19: #{tpu_custom_call.1} parent=1 // pred_check_branch
      %94 = sbr.rel (0) target = $region21
    $region20: #{tpu_custom_call.1} parent=1 // pred_region
      %s96 = ssub.s32 64, 64
      %97 = vsyncadd [#allocation4], %s96
      %s99 = sshll.u32 [#allocation5], 4
      %s100 = int_to_ptr.vmem [resolvable:$true] %s99
      %102 = dma.vmem_to_hbm [thread:$0]  %s100, 64, %s3, [#allocation4]
    $region21: #{tpu_custom_call.1} parent=1 // pred_fallthru
      _
    // Predicated region
    $region22: #{tpu_custom_call.1} parent=1 // pred_check
      _
    $region23: #{tpu_custom_call.1} parent=1 // pred_check_branch
      %104 = sbr.rel (0) target = $region25
    $region24: #{tpu_custom_call.1} parent=1 // pred_region
      %105 = dma.done [#allocation4], 64
    $region25: #{tpu_custom_call.1} parent=1 // pred_fallthru
      _
    %106 = vsyncpa [#allocation3], 1
    %107 = vsyncpa [#allocation4], 1

</llo_original>
